<compile_context>
chip_gen: v5e
topology: v5e:2x2
jax: 0.10.0
libtpu: 0.0.40
codegen_flags: <defaults>
</compile_context>

<pallas_src>
import functools

import jax
import jax.numpy as jnp
from jax.experimental import pallas as pl
from jax.experimental.pallas import tpu as pltpu


def _iou_loss_kernel(x_ref, t_ref, *rest, loc_loss_type, use_weight, n_true):
    # x_ref, t_ref: (4, TM, 128) VMEM; optional w_ref: (TM, 128) VMEM;
    # out_ref: (1, 1) SMEM; acc_ref: (3,) SMEM scratch
    #   acc[0] = sum(loss), acc[1] = sum(loss * w), acc[2] = sum(w).
    if use_weight:
        w_ref, out_ref, acc_ref = rest
    else:
        out_ref, acc_ref = rest
        w_ref = None

    step = pl.program_id(0)

    @pl.when(step == 0)
    def _():
        acc_ref[0] = 0.0
        acc_ref[1] = 0.0
        acc_ref[2] = 0.0

    # Dense (TM, 128) component slabs — full-vreg VPU utilization.
    il, ir, it, ib = x_ref[0], x_ref[1], x_ref[2], x_ref[3]
    tl, tr, tt, tb = t_ref[0], t_ref[1], t_ref[2], t_ref[3]

    input_area = (il + ir) * (it + ib)
    target_area = (tl + tr) * (tt + tb)

    inter_w = jnp.minimum(il, tl) + jnp.minimum(ir, tr)
    inter_h = jnp.minimum(ib, tb) + jnp.minimum(it, tt)
    inter_area = inter_w * inter_h
    union_area = input_area + target_area - inter_area

    iou = (inter_area + 1.0) / (union_area + 1.0)

    if loc_loss_type == 'iou':
        loss = -jnp.log(iou)
    elif loc_loss_type == 'linear_iou':
        loss = 1.0 - iou
    elif loc_loss_type == 'giou':
        inter_w_g = jnp.maximum(il, tl) + jnp.maximum(ir, tr)
        inter_h_g = jnp.maximum(ib, tb) + jnp.maximum(it, tt)
        enclose_area = inter_w_g * inter_h_g
        # Matches torch: no epsilon on enclose_area (0/0 -> nan like reference).
        giou = iou - (enclose_area - union_area) / enclose_area
        loss = 1.0 - giou
    else:
        raise NotImplementedError(loc_loss_type)

    # Per-tile reductions (XLU slot), accumulated into SMEM scalars.
    # Padded boxes contribute exactly 0 loss (pad value 1.0) and 0 weight.
    acc_ref[0] += jnp.sum(loss)
    if use_weight:
        w = w_ref[...]
        acc_ref[1] += jnp.sum(loss * w)
        acc_ref[2] += jnp.sum(w)

    @pl.when(step == pl.num_programs(0) - 1)
    def _():
        mean_loss = acc_ref[0] / jnp.float32(n_true)
        if use_weight:
            wsum = acc_ref[2]
            weighted = acc_ref[1] / jnp.where(wsum > 0.0, wsum, 1.0)
            out_ref[0, 0] = jnp.where(wsum > 0.0, weighted, mean_loss)
        else:
            out_ref[0, 0] = mean_loss


def iou_loss(input_boxes, target_boxes, weight=None, loc_loss_type='iou',
             block_rows=512):
    """Pallas implementation of IoULoss.forward.

    input_boxes, target_boxes: (N, 4) arrays of (l, r, t, b) offsets.
    weight: optional (N,) array.
    block_rows: rows of 128 boxes per grid step (512 -> 64K boxes / ~1 MB tile).
    Returns a scalar float32 loss.
    """
    n = input_boxes.shape[0]
    x = jnp.asarray(input_boxes, jnp.float32)
    t = jnp.asarray(target_boxes, jnp.float32)
    use_weight = weight is not None

    lanes = 128
    m = pl.cdiv(n, lanes)                      # rows of 128 boxes
    tm = min(block_rows, m)
    if tm < m:                                 # tiled: sublane dim must be %8
        tm = max(8, (tm // 8) * 8)
    grid_m = pl.cdiv(m, tm)
    m_pad = grid_m * tm
    n_pad = m_pad * lanes

    # Single relayout pass: pad (with 1.0 -> exactly-zero loss for padded
    # boxes) + transpose + reshape into the (4, M, 128) component layout.
    def repack_boxes(a):
        a = jnp.pad(a, ((0, n_pad - n), (0, 0)), constant_values=1.0)
        return a.T.reshape(4, m_pad, lanes)

    args = [repack_boxes(x), repack_boxes(t)]
    in_specs = [
        pl.BlockSpec((4, tm, lanes), lambda i: (0, i, 0)),
        pl.BlockSpec((4, tm, lanes), lambda i: (0, i, 0)),
    ]
    if use_weight:
        w = jnp.asarray(weight, jnp.float32).reshape(-1)
        w = jnp.pad(w, (0, n_pad - n), constant_values=0.0)
        args.append(w.reshape(m_pad, lanes))
        in_specs.append(pl.BlockSpec((tm, lanes), lambda i: (i, 0)))

    kernel = functools.partial(
        _iou_loss_kernel, loc_loss_type=loc_loss_type,
        use_weight=use_weight, n_true=n)

    n_in_bytes = (2 * 4 + (1 if use_weight else 0)) * 4 * n
    cost = pl.CostEstimate(
        flops=(31 if loc_loss_type == 'giou' else 25) * n,
        transcendentals=n if loc_loss_type == 'iou' else 0,
        bytes_accessed=n_in_bytes + 4)

    out = pl.pallas_call(
        kernel,
        out_shape=jax.ShapeDtypeStruct((1, 1), jnp.float32),
        grid=(grid_m,),
        in_specs=in_specs,
        out_specs=pl.BlockSpec((1, 1), lambda i: (0, 0),
                               memory_space=pltpu.MemorySpace.SMEM),
        scratch_shapes=[pltpu.SMEM((3,), jnp.float32)],
        compiler_params=pltpu.CompilerParams(
            dimension_semantics=("arbitrary",)),
        cost_estimate=cost,
    )(*args)
    return out[0, 0]


def _reference(input_boxes, target_boxes, weight, loc_loss_type):
    # Plain-JAX reference mirroring the PyTorch code, for a sanity check.
    il, ir, it, ib = [input_boxes[:, i] for i in range(4)]
    tl, tr, tt, tb = [target_boxes[:, i] for i in range(4)]
    input_area = (il + ir) * (it + ib)
    target_area = (tl + tr) * (tt + tb)
    inter_w = jnp.minimum(il, tl) + jnp.minimum(ir, tr)
    inter_h = jnp.minimum(ib, tb) + jnp.minimum(it, tt)
    inter_w_g = jnp.maximum(il, tl) + jnp.maximum(ir, tr)
    inter_h_g = jnp.maximum(ib, tb) + jnp.maximum(it, tt)
    enclose_area = inter_w_g * inter_h_g
    inter_area = inter_w * inter_h
    union_area = input_area + target_area - inter_area
    iou = (inter_area + 1.0) / (union_area + 1.0)
    giou = iou - (enclose_area - union_area) / enclose_area
    if loc_loss_type == 'iou':
        loss = -jnp.log(iou)
    elif loc_loss_type == 'linear_iou':
        loss = 1.0 - iou
    elif loc_loss_type == 'giou':
        loss = 1.0 - giou
    else:
        raise NotImplementedError
    if weight is not None and jnp.sum(weight) > 0:
        return jnp.sum(loss * weight) / jnp.sum(weight)
    return jnp.mean(loss)


if __name__ == "__main__":
    key = jax.random.PRNGKey(0)
    k1, k2, k3 = jax.random.split(key, 3)

    ok = True
    # (N, block_rows): small single-tile case, and a multi-step grid case that
    # exercises padding + the running SMEM accumulator.
    for N, block_rows in ((8, 512), (2000, 8)):
        inp = jax.random.uniform(k1, (N, 4), jnp.float32, minval=0.5, maxval=4.0)
        tgt = jax.random.uniform(k2, (N, 4), jnp.float32, minval=0.5, maxval=4.0)
        wgt = jax.random.uniform(k3, (N,), jnp.float32, minval=0.0, maxval=1.0)
        for loss_type in ('iou', 'linear_iou', 'giou'):
            for w in (wgt, None):
                got = jax.block_until_ready(
                    iou_loss(inp, tgt, w, loc_loss_type=loss_type,
                             block_rows=block_rows))
                want = _reference(inp, tgt, w, loss_type)
                ok &= bool(jnp.allclose(got, want, rtol=1e-5, atol=1e-5))

    if ok:
        print("KERNEL_OK")
    else:
        print("KERNEL_MISMATCH")
</pallas_src>

<mosaic_0001>
module attributes {stable_mosaic.version = 11 : i64} {
  func.func @_iou_loss_kernel(%arg0: i32, %arg1: memref<4x1x128xf32, #tpu.memory_space<vmem>>, %arg2: memref<4x1x128xf32, #tpu.memory_space<vmem>>, %arg3: memref<1x128xf32, #tpu.memory_space<vmem>>, %arg4: memref<1x1xf32, #tpu.memory_space<smem>>, %arg5: memref<3xf32, #tpu.memory_space<smem>>) attributes {dimension_semantics = [#tpu.dimension_semantics<arbitrary>], iteration_bounds = array<i64: 1>, scalar_prefetch = 0 : i64, scratch_operands = 1 : i64, tpu.core_type = #tpu.core_type<tc>, window_params = [{transform_indices = @transform_0, window_bounds = array<i64: 4, 1, 128>}, {transform_indices = @transform_1, window_bounds = array<i64: 4, 1, 128>}, {transform_indices = @transform_2, window_bounds = array<i64: 1, 128>}, {transform_indices = @transform_3, window_bounds = array<i64: 1, 1>}]} {
    %c0_i32 = arith.constant 0 : i32
    %0 = arith.cmpi eq, %arg0, %c0_i32 : i32
    %1 = arith.extui %0 : i1 to i32
    %c0_i32_0 = arith.constant 0 : i32
    %2 = arith.cmpi ne, %1, %c0_i32_0 : i32
    scf.if %2 {
      %cst_36 = arith.constant 0.000000e+00 : f32
      %c0_37 = arith.constant 0 : index
      %68 = memref.load %arg5[%c0_37] : memref<3xf32, #tpu.memory_space<smem>>
      memref.store %cst_36, %arg5[%c0_37] : memref<3xf32, #tpu.memory_space<smem>>
      %cst_38 = arith.constant 0.000000e+00 : f32
      %c1_39 = arith.constant 1 : index
      %69 = memref.load %arg5[%c1_39] : memref<3xf32, #tpu.memory_space<smem>>
      memref.store %cst_38, %arg5[%c1_39] : memref<3xf32, #tpu.memory_space<smem>>
      %cst_40 = arith.constant 0.000000e+00 : f32
      %c2_41 = arith.constant 2 : index
      %70 = memref.load %arg5[%c2_41] : memref<3xf32, #tpu.memory_space<smem>>
      memref.store %cst_40, %arg5[%c2_41] : memref<3xf32, #tpu.memory_space<smem>>
    } else {
    }
    %c0 = arith.constant 0 : index
    %c0_1 = arith.constant 0 : index
    %c0_2 = arith.constant 0 : index
    %3 = vector.load %arg1[%c0, %c0_1, %c0_2] : memref<4x1x128xf32, #tpu.memory_space<vmem>>, vector<1x1x128xf32>
    %4 = vector.shape_cast %3 : vector<1x1x128xf32> to vector<1x128xf32>
    %c1 = arith.constant 1 : index
    %c0_3 = arith.constant 0 : index
    %c0_4 = arith.constant 0 : index
    %5 = vector.load %arg1[%c1, %c0_3, %c0_4] : memref<4x1x128xf32, #tpu.memory_space<vmem>>, vector<1x1x128xf32>
    %6 = vector.shape_cast %5 : vector<1x1x128xf32> to vector<1x128xf32>
    %c2 = arith.constant 2 : index
    %c0_5 = arith.constant 0 : index
    %c0_6 = arith.constant 0 : index
    %7 = vector.load %arg1[%c2, %c0_5, %c0_6] : memref<4x1x128xf32, #tpu.memory_space<vmem>>, vector<1x1x128xf32>
    %8 = vector.shape_cast %7 : vector<1x1x128xf32> to vector<1x128xf32>
    %c3 = arith.constant 3 : index
    %c0_7 = arith.constant 0 : index
    %c0_8 = arith.constant 0 : index
    %9 = vector.load %arg1[%c3, %c0_7, %c0_8] : memref<4x1x128xf32, #tpu.memory_space<vmem>>, vector<1x1x128xf32>
    %10 = vector.shape_cast %9 : vector<1x1x128xf32> to vector<1x128xf32>
    %c0_9 = arith.constant 0 : index
    %c0_10 = arith.constant 0 : index
    %c0_11 = arith.constant 0 : index
    %11 = vector.load %arg2[%c0_9, %c0_10, %c0_11] : memref<4x1x128xf32, #tpu.memory_space<vmem>>, vector<1x1x128xf32>
    %12 = vector.shape_cast %11 : vector<1x1x128xf32> to vector<1x128xf32>
    %c1_12 = arith.constant 1 : index
    %c0_13 = arith.constant 0 : index
    %c0_14 = arith.constant 0 : index
    %13 = vector.load %arg2[%c1_12, %c0_13, %c0_14] : memref<4x1x128xf32, #tpu.memory_space<vmem>>, vector<1x1x128xf32>
    %14 = vector.shape_cast %13 : vector<1x1x128xf32> to vector<1x128xf32>
    %c2_15 = arith.constant 2 : index
    %c0_16 = arith.constant 0 : index
    %c0_17 = arith.constant 0 : index
    %15 = vector.load %arg2[%c2_15, %c0_16, %c0_17] : memref<4x1x128xf32, #tpu.memory_space<vmem>>, vector<1x1x128xf32>
    %16 = vector.shape_cast %15 : vector<1x1x128xf32> to vector<1x128xf32>
    %c3_18 = arith.constant 3 : index
    %c0_19 = arith.constant 0 : index
    %c0_20 = arith.constant 0 : index
    %17 = vector.load %arg2[%c3_18, %c0_19, %c0_20] : memref<4x1x128xf32, #tpu.memory_space<vmem>>, vector<1x1x128xf32>
    %18 = vector.shape_cast %17 : vector<1x1x128xf32> to vector<1x128xf32>
    %19 = arith.addf %4, %6 : vector<1x128xf32>
    %20 = arith.addf %8, %10 : vector<1x128xf32>
    %21 = arith.mulf %19, %20 : vector<1x128xf32>
    %22 = arith.addf %12, %14 : vector<1x128xf32>
    %23 = arith.addf %16, %18 : vector<1x128xf32>
    %24 = arith.mulf %22, %23 : vector<1x128xf32>
    %25 = arith.minimumf %4, %12 : vector<1x128xf32>
    %26 = arith.minimumf %6, %14 : vector<1x128xf32>
    %27 = arith.addf %25, %26 : vector<1x128xf32>
    %28 = arith.minimumf %10, %18 : vector<1x128xf32>
    %29 = arith.minimumf %8, %16 : vector<1x128xf32>
    %30 = arith.addf %28, %29 : vector<1x128xf32>
    %31 = arith.mulf %27, %30 : vector<1x128xf32>
    %32 = arith.addf %21, %24 : vector<1x128xf32>
    %33 = arith.subf %32, %31 : vector<1x128xf32>
    %cst = arith.constant 1.000000e+00 : f32
    %34 = vector.broadcast %cst : f32 to vector<1x128xf32>
    %35 = arith.addf %31, %34 : vector<1x128xf32>
    %cst_21 = arith.constant 1.000000e+00 : f32
    %36 = vector.broadcast %cst_21 : f32 to vector<1x128xf32>
    %37 = arith.addf %33, %36 : vector<1x128xf32>
    %38 = arith.divf %35, %37 : vector<1x128xf32>
    %39 = math.log %38 : vector<1x128xf32>
    %cst_22 = arith.constant 0.000000e+00 : f32
    %40 = vector.broadcast %cst_22 : f32 to vector<1x128xf32>
    %41 = arith.subf %40, %39 : vector<1x128xf32>
    %c0_23 = arith.constant 0 : index
    %42 = memref.load %arg5[%c0_23] : memref<3xf32, #tpu.memory_space<smem>>
    %43 = vector.shape_cast %41 : vector<1x128xf32> to vector<1x1x128xf32>
    %cst_24 = arith.constant dense<0.000000e+00> : vector<1xf32>
    %44 = vector.multi_reduction <add>, %43, %cst_24 [1, 2] : vector<1x1x128xf32> to vector<1xf32>
    %45 = vector.shape_cast %44 : vector<1xf32> to vector<1x1x1xf32>
    %46 = vector.extract %45[0, 0, 0] : f32 from vector<1x1x1xf32>
    %47 = arith.addf %42, %46 : f32
    %c0_25 = arith.constant 0 : index
    %48 = memref.load %arg5[%c0_25] : memref<3xf32, #tpu.memory_space<smem>>
    memref.store %47, %arg5[%c0_25] : memref<3xf32, #tpu.memory_space<smem>>
    %c0_26 = arith.constant 0 : index
    %c0_27 = arith.constant 0 : index
    %49 = vector.load %arg3[%c0_26, %c0_27] : memref<1x128xf32, #tpu.memory_space<vmem>>, vector<1x128xf32>
    %c1_28 = arith.constant 1 : index
    %50 = memref.load %arg5[%c1_28] : memref<3xf32, #tpu.memory_space<smem>>
    %51 = arith.mulf %41, %49 : vector<1x128xf32>
    %52 = vector.shape_cast %51 : vector<1x128xf32> to vector<1x1x128xf32>
    %cst_29 = arith.constant dense<0.000000e+00> : vector<1xf32>
    %53 = vector.multi_reduction <add>, %52, %cst_29 [1, 2] : vector<1x1x128xf32> to vector<1xf32>
    %54 = vector.shape_cast %53 : vector<1xf32> to vector<1x1x1xf32>
    %55 = vector.extract %54[0, 0, 0] : f32 from vector<1x1x1xf32>
    %56 = arith.addf %50, %55 : f32
    %c1_30 = arith.constant 1 : index
    %57 = memref.load %arg5[%c1_30] : memref<3xf32, #tpu.memory_space<smem>>
    memref.store %56, %arg5[%c1_30] : memref<3xf32, #tpu.memory_space<smem>>
    %c2_31 = arith.constant 2 : index
    %58 = memref.load %arg5[%c2_31] : memref<3xf32, #tpu.memory_space<smem>>
    %59 = vector.shape_cast %49 : vector<1x128xf32> to vector<1x1x128xf32>
    %cst_32 = arith.constant dense<0.000000e+00> : vector<1xf32>
    %60 = vector.multi_reduction <add>, %59, %cst_32 [1, 2] : vector<1x1x128xf32> to vector<1xf32>
    %61 = vector.shape_cast %60 : vector<1xf32> to vector<1x1x1xf32>
    %62 = vector.extract %61[0, 0, 0] : f32 from vector<1x1x1xf32>
    %63 = arith.addf %58, %62 : f32
    %c2_33 = arith.constant 2 : index
    %64 = memref.load %arg5[%c2_33] : memref<3xf32, #tpu.memory_space<smem>>
    memref.store %63, %arg5[%c2_33] : memref<3xf32, #tpu.memory_space<smem>>
    %c0_i32_34 = arith.constant 0 : i32
    %65 = arith.cmpi eq, %arg0, %c0_i32_34 : i32
    %66 = arith.extui %65 : i1 to i32
    %c0_i32_35 = arith.constant 0 : i32
    %67 = arith.cmpi ne, %66, %c0_i32_35 : i32
    scf.if %67 {
      %c0_36 = arith.constant 0 : index
      %68 = memref.load %arg5[%c0_36] : memref<3xf32, #tpu.memory_space<smem>>
      %cst_37 = arith.constant 8.000000e+00 : f32
      %69 = arith.divf %68, %cst_37 : f32
      %c2_38 = arith.constant 2 : index
      %70 = memref.load %arg5[%c2_38] : memref<3xf32, #tpu.memory_space<smem>>
      %c1_39 = arith.constant 1 : index
      %71 = memref.load %arg5[%c1_39] : memref<3xf32, #tpu.memory_space<smem>>
      %cst_40 = arith.constant 0.000000e+00 : f32
      %72 = arith.cmpf ogt, %70, %cst_40 : f32
      %cst_41 = arith.constant 1.000000e+00 : f32
      %73 = arith.select %72, %70, %cst_41 : f32
      %74 = arith.divf %71, %73 : f32
      %cst_42 = arith.constant 0.000000e+00 : f32
      %75 = arith.cmpf ogt, %70, %cst_42 : f32
      %76 = arith.select %75, %74, %69 : f32
      %c0_43 = arith.constant 0 : index
      %c0_44 = arith.constant 0 : index
      %77 = memref.load %arg4[%c0_43, %c0_44] : memref<1x1xf32, #tpu.memory_space<smem>>
      memref.store %76, %arg4[%c0_43, %c0_44] : memref<1x1xf32, #tpu.memory_space<smem>>
    } else {
    }
    return
  }
  func.func @transform_0(%arg0: i32) -> (i32, i32, i32) {
    %c0_i32 = arith.constant 0 : i32
    %c0_i32_0 = arith.constant 0 : i32
    %c0_i32_1 = arith.constant 0 : i32
    return %c0_i32, %arg0, %c0_i32_0 : i32, i32, i32
  }
  func.func @transform_1(%arg0: i32) -> (i32, i32, i32) {
    %c0_i32 = arith.constant 0 : i32
    %c0_i32_0 = arith.constant 0 : i32
    %c0_i32_1 = arith.constant 0 : i32
    return %c0_i32, %arg0, %c0_i32_0 : i32, i32, i32
  }
  func.func @transform_2(%arg0: i32) -> (i32, i32) {
    %c0_i32 = arith.constant 0 : i32
    %c0_i32_0 = arith.constant 0 : i32
    return %arg0, %c0_i32 : i32, i32
  }
  func.func @transform_3(%arg0: i32) -> (i32, i32) {
    %c0_i32 = arith.constant 0 : i32
    %c0_i32_0 = arith.constant 0 : i32
    %c0_i32_1 = arith.constant 0 : i32
    return %c0_i32, %c0_i32_0 : i32, i32
  }
}

</mosaic_0001>

<llo_original>
// kernel: tpu_custom_call.1
$region0: #{tpu_custom_call.1}
  #allocation0 [shape = 'u32[]', space=smem, size = 0x4, offset = 0x4, fixed_abs, tag = 'smem constant byte address 0x4 - core index']
  #allocation1 [shape = 'u32[72,128]{1,0:T(1,128)}', space=vmem, size = 0x9000, scoped, tag = 'internal scratch']
  #allocation2 [shape = 'f32[3]{0:T(128)}', space=smem, size = 0x200, scoped, tag = 'scratch operand']
  %s0 = inlined_call_operand.hbm [shape: f32[4,1,128], index: 0, kind: input, shape index: {}]
  %s1 = inlined_call_operand.hbm [shape: f32[4,1,128], index: 1, kind: input, shape index: {}]
  %s2 = inlined_call_operand.vmem [shape: f32[1,128], index: 2, kind: input, shape index: {}]
  %s3 = inlined_call_operand.hbm [shape: f32[1,1], index: 3, kind: output, shape index: {}]
  %s4 = sld [smem:[#allocation0]]
  $region38: #{tpu_custom_call.1} parent=0
    _
  %s6 = ssub.s32 1, %s4
  %s7 = scalar_select 0, %s6, %s4
  $region1: #{tpu_custom_call.1} parent=0
    #allocation3 [shape = 'u8[2048]{0}', space=vmem, size = 0x800, scoped, tag = 'input window, operand 0, single buffered']
    #allocation4 [shape = 's32[1]{0}', space=sflag, size = 0x4, scoped, tag = 'scoped memory for tpu_custom_call.1']
    #allocation5 [shape = 's32[1]{0}', space=sflag, size = 0x4, scoped, tag = 'scoped memory for tpu_custom_call.1']
    #allocation6 [shape = 'u8[2048]{0}', space=vmem, size = 0x800, scoped, tag = 'input window, operand 1, single buffered']
    #allocation7 [shape = 's32[1]{0}', space=sflag, size = 0x4, scoped, tag = 'scoped memory for tpu_custom_call.1']
    #allocation8 [shape = 'u8[512]{0}', space=smem, size = 0x200, scoped, tag = 'output window, operand 0, single buffered']
    %8 = vsyncpa [#allocation4], 0
    %9 = vsyncpa [#allocation7], 0
    %10 = vsyncpa [#allocation5], 0
    // Predicated region
    $region2: #{tpu_custom_call.1} parent=1 // pred_check
      _
    $region3: #{tpu_custom_call.1} parent=1 // pred_check_branch
      %12 = sbr.rel (0) target = $region5
    $region4: #{tpu_custom_call.1} parent=1 // pred_region
      %14 = vsyncadd [#allocation4], 0
      %s15 = sshll.u32 %s0, 4
      %s16 = int_to_ptr.hbm [resolvable:$true] %s15
      %s17 = sshll.u32 [#allocation3], 4
      %s18 = int_to_ptr.vmem [resolvable:$true] %s17
      %23 = dma.hbm_to_vmem [thread:$0]  %s16, 64, %s18, [#allocation4], 16, 16, 1
    $region5: #{tpu_custom_call.1} parent=1 // pred_fallthru
      _
    // Predicated region
    $region6: #{tpu_custom_call.1} parent=1 // pred_check
      _
    $region7: #{tpu_custom_call.1} parent=1 // pred_check_branch
      %25 = sbr.rel (0) target = $region9
    $region8: #{tpu_custom_call.1} parent=1 // pred_region
      %27 = vsyncadd [#allocation7], 0
      %s28 = sshll.u32 %s1, 4
      %s29 = int_to_ptr.hbm [resolvable:$true] %s28
      %s30 = sshll.u32 [#allocation6], 4
      %s31 = int_to_ptr.vmem [resolvable:$true] %s30
      %36 = dma.hbm_to_vmem [thread:$0]  %s29, 64, %s31, [#allocation7], 16, 16, 1
    $region9: #{tpu_custom_call.1} parent=1 // pred_fallthru
      _
    // Predicated region
    $region10: #{tpu_custom_call.1} parent=1 // pred_check
      _
    $region11: #{tpu_custom_call.1} parent=1 // pred_check_branch
      %38 = sbr.rel (0) target = $region13
    $region12: #{tpu_custom_call.1} parent=1 // pred_region
      _
    $region13: #{tpu_custom_call.1} parent=1 // pred_fallthru
      _
    // Predicated region
    $region14: #{tpu_custom_call.1} parent=1 // pred_check
      _
    $region15: #{tpu_custom_call.1} parent=1 // pred_check_branch
      %40 = sbr.rel (0) target = $region17
    $region16: #{tpu_custom_call.1} parent=1 // pred_region
      %42 = dma.done [#allocation4], 64
    $region17: #{tpu_custom_call.1} parent=1 // pred_fallthru
      _
    // Predicated region
    $region18: #{tpu_custom_call.1} parent=1 // pred_check
      _
    $region19: #{tpu_custom_call.1} parent=1 // pred_check_branch
      %44 = sbr.rel (0) target = $region21
    $region20: #{tpu_custom_call.1} parent=1 // pred_region
      %46 = dma.done [#allocation7], 64
    $region21: #{tpu_custom_call.1} parent=1 // pred_fallthru
      _
    %p47 = scmp.eq.s32.totalorder 0, 0
    // Predicated region
    $region22: #{tpu_custom_call.1} parent=1 // pred_check
      %p48 = pneg %p47
    $region23: #{tpu_custom_call.1} parent=1 // pred_check_branch
      %50 = sbr.rel (%p48) target = $region25
    $region24: #{tpu_custom_call.1} parent=1 // pred_region
      %s51 = scalar_lea.smem [#allocation2], 0
      %52 = sst [smem:[%s51]] 0.0
      %s53 = scalar_lea.smem [#allocation2], 1
      %54 = sst [smem:[%s53]] 0.0
      %s55 = scalar_lea.smem [#allocation2], 2
      %56 = sst [smem:[%s55]] 0.0
    $region25: #{tpu_custom_call.1} parent=1 // pred_fallthru
      _
    %v57 = vld [vmem:[#allocation3] sm:$0x1]
    %s58 = scalar_lea.vmem [#allocation3], 1
    %v59 = vld [vmem:[%s58] sm:$0x1]
    %s60 = scalar_lea.vmem [#allocation3], 2
    %v61 = vld [vmem:[%s60] sm:$0x1]
    %s62 = scalar_lea.vmem [#allocation3], 3
    %v63 = vld [vmem:[%s62] sm:$0x1]
    %v64 = vld [vmem:[#allocation6] sm:$0x1]
    %s65 = scalar_lea.vmem [#allocation6], 1
    %v66 = vld [vmem:[%s65] sm:$0x1]
    %s67 = scalar_lea.vmem [#allocation6], 2
    %v68 = vld [vmem:[%s67] sm:$0x1]
    %s69 = scalar_lea.vmem [#allocation6], 3
    %v70 = vld [vmem:[%s69] sm:$0x1]
    %v71 = vadd.f32 %v57, %v59
    %v72 = vadd.f32 %v61, %v63
    %v73 = vmul.f32 %v71, %v72
    %v74 = vadd.f32 %v64, %v66
    %v75 = vadd.f32 %v68, %v70
    %v76 = vmul.f32 %v74, %v75
    %v77 = vmin.f32 %v57, %v64
    %v78 = vmin.f32 %v59, %v66
    %v79 = vadd.f32 %v77, %v78
    %v80 = vmin.f32 %v63, %v70
    %v81 = vmin.f32 %v61, %v68
    %v82 = vadd.f32 %v80, %v81
    %v83 = vmul.f32 %v79, %v82
    %v84 = vadd.f32 %v73, %v76
    %v85 = vsub.f32 %v84, %v83
    %v86 = vadd.f32 %v83, 1.0
    %v87 = vadd.f32 %v85, 1.0
    %v88 = vrcp.pop %v87
    %v89 = vmul.f32 %v87, %v88
    %v90 = vsub.f32 1.0, %v89
    %v91 = vmul.f32 %v88, %v90
    %v92 = vadd.f32 %v88, %v91
    %vm93 = vweird.f32 %v87
    %vm94 = vweird.f32 %v88
    %vm95 = vmor %vm93, %vm94
    %v96 = vsel %vm95, %v88, %v92
    %v97 = vand.u32 2147483647, %v87
    %vm98 = vcmp.eq.f32.partialorder %v97, 8.507059e+37
    %v99 = vand.u32 %v87, 2147483648
    %v100 = vor.u32 1.1754944e-38, %v99
    %v101 = vsel %vm98, %v100, %v96
    %v102 = vmul.f32 %v86, %v101
    %v103 = vlog2.pop %v102
    %v104 = vmul.f32 %v103, 0.6931472
    %v105 = vsub.f32 0.0, %v104
    %s106 = sld [smem:[#allocation2]]
    %vm107 = vcmask 1040384
    %v108 = vsel %vm107, %v105, 0.0
    %109 = vadd.xlane.f32.xlu0 %v108
    %v110 = vpop.xlane.xlu0 %109
    %v111 = vrot.slane %v110, 4
    %v112 = vadd.f32 %v110, %v111
    %v113 = vrot.slane %v112, 2
    %v114 = vadd.f32 %v112, %v113
    %v115 = vrot.slane %v114, 1
    %v116 = vadd.f32 %v114, %v115
    %s117 = vtos %v116
    %s118 = sadd.f32 %s106, %s117
    %s119 = scalar_lea.smem [#allocation2], 0
    %120 = sst [smem:[%s119]] %s118
    %v121 = vld [vmem:[%s2] sm:$0x1]
    %s122 = sld [smem:[#allocation2 + $0x1]]
    %v123 = vmul.f32 %v105, %v121
    %v124 = vsel %vm107, %v123, 0.0
    %125 = vadd.xlane.f32.xlu0 %v124
    %v126 = vpop.xlane.xlu0 %125
    %v127 = vrot.slane %v126, 4
    %v128 = vadd.f32 %v126, %v127
    %v129 = vrot.slane %v128, 2
    %v130 = vadd.f32 %v128, %v129
    %v131 = vrot.slane %v130, 1
    %v132 = vadd.f32 %v130, %v131
    %s133 = vtos %v132
    %s134 = sadd.f32 %s122, %s133
    %s135 = scalar_lea.smem [#allocation2], 1
    %136 = sst [smem:[%s135]] %s134
    %s137 = sld [smem:[#allocation2 + $0x2]]
    %v138 = vsel %vm107, %v121, 0.0
    %139 = vadd.xlane.f32.xlu0 %v138
    %v140 = vpop.xlane.xlu0 %139
    %v141 = vrot.slane %v140, 4
    %v142 = vadd.f32 %v140, %v141
    %v143 = vrot.slane %v142, 2
    %v144 = vadd.f32 %v142, %v143
    %v145 = vrot.slane %v144, 1
    %v146 = vadd.f32 %v144, %v145
    %s147 = vtos %v146
    %s148 = sadd.f32 %s137, %s147
    %s149 = scalar_lea.smem [#allocation2], 2
    %150 = sst [smem:[%s149]] %s148
    // Predicated region
    $region26: #{tpu_custom_call.1} parent=1 // pred_check
      %p151 = pneg %p47
    $region27: #{tpu_custom_call.1} parent=1 // pred_check_branch
      %153 = sbr.rel (%p151) target = $region29
    $region28: #{tpu_custom_call.1} parent=1 // pred_region
      %s154 = sld [smem:[#allocation2]]
      %v155 = vrcp.pop 8.0
      %v156 = vmul.f32 8.0, %v155
      %v157 = vsub.f32 1.0, %v156
      %v158 = vmul.f32 %v155, %v157
      %v159 = vadd.f32 %v155, %v158
      %vm160 = vweird.f32 %v155
      %v161 = vsel %vm160, %v155, %v159
      %s162 = vtos %v161
      %s163 = smul.f32 %s154, %s162
      %s164 = sld [smem:[#allocation2 + $0x2]]
      %s165 = sld [smem:[#allocation2 + $0x1]]
      %p166 = scmp.gt.f32.partialorder %s164, 0.0
      %s167 = scalar_select %p166, %s164, 1.0
      %v168 = vstv %s167
      %v169 = vrcp.pop %v168
      %v170 = vmul.f32 %v168, %v169
      %v171 = vsub.f32 1.0, %v170
      %v172 = vmul.f32 %v169, %v171
      %v173 = vadd.f32 %v169, %v172
      %vm174 = vweird.f32 %v168
      %vm175 = vweird.f32 %v169
      %vm176 = vmor %vm174, %vm175
      %v177 = vsel %vm176, %v169, %v173
      %v178 = vand.u32 2147483647, %v168
      %vm179 = vcmp.eq.f32.partialorder %v178, 8.507059e+37
      %v180 = vand.u32 %v168, 2147483648
      %v181 = vor.u32 1.1754944e-38, %v180
      %v182 = vsel %vm179, %v181, %v177
      %s183 = vtos %v182
      %s184 = smul.f32 %s165, %s183
      %s185 = scalar_select %p166, %s184, %s163
      %s186 = scalar_lea.smem [#allocation8], 0
      %187 = sst [smem:[%s186]] %s185
    $region29: #{tpu_custom_call.1} parent=1 // pred_fallthru
      _
    // Predicated region
    $region30: #{tpu_custom_call.1} parent=1 // pred_check
      _
    $region31: #{tpu_custom_call.1} parent=1 // pred_check_branch
      %189 = sbr.rel (0) target = $region33
    $region32: #{tpu_custom_call.1} parent=1 // pred_region
      %191 = vsyncadd [#allocation5], 0
      %s193 = sshll.u32 %s3, 4
      %s194 = int_to_ptr.hbm [resolvable:$true] %s193
      %196 = dma.smem_to_hbm [#allocation8], 16, %s194, [#allocation5]
    $region33: #{tpu_custom_call.1} parent=1 // pred_fallthru
      _
    // Predicated region
    $region34: #{tpu_custom_call.1} parent=1 // pred_check
      _
    $region35: #{tpu_custom_call.1} parent=1 // pred_check_branch
      %198 = sbr.rel (0) target = $region37
    $region36: #{tpu_custom_call.1} parent=1 // pred_region
      %200 = dma.done [#allocation5], 16
    $region37: #{tpu_custom_call.1} parent=1 // pred_fallthru
      _
    %201 = sfence
    %202 = vsyncpa [#allocation4], 1
    %203 = vsyncpa [#allocation7], 1
    %204 = vsyncpa [#allocation5], 1

</llo_original>
